<compile_context>
chip_gen: v5e
topology: v5e:2x2
jax: 0.10.0
libtpu: 0.0.40
codegen_flags: <defaults>
</compile_context>

<pallas_src>
import functools
import math

import jax
import jax.numpy as jnp
from jax.experimental import pallas as pl
from jax.experimental.pallas import tpu as pltpu

# 32 MiB scoped VMEM is safe on v5e/v6e (128 MiB physical) and v7x (64 MiB
# physical, 32 MiB default scoped limit). Tiles below are sized so that the
# double-buffered working set stays far under this on every generation.
VMEM_LIMIT_BYTES = 32 * 1024 * 1024


def _round_up(x, m):
    return (x + m - 1) // m * m


def _pick_row_tile(m, max_tile=256):
    """Fixed row tile: multiple of 8 sublanes, MXU-M friendly (<=256).

    Never defaults to "the whole array" for large M, so BlockSpec
    double-buffering and megacore sharding stay effective."""
    return min(max_tile, _round_up(m, 8))


def _pad_rows(x2d, m_pad):
    m = x2d.shape[0]
    if m_pad == m:
        return x2d
    return jnp.pad(x2d, ((0, m_pad - m), (0, 0)))


def _nbytes(*arrays):
    return int(sum(a.size * a.dtype.itemsize for a in arrays))


# --------------------------------------------------------------------------
# Linear: y = x @ W + b   (W stored pre-transposed as (in, out))
# --------------------------------------------------------------------------
def _linear_kernel(x_ref, w_ref, b_ref, o_ref):
    y = jnp.dot(x_ref[...], w_ref[...], preferred_element_type=jnp.float32)
    o_ref[...] = (y + b_ref[...].astype(jnp.float32)).astype(o_ref.dtype)


def linear(x2d, w, b, *, tm=None):
    m, k = x2d.shape
    n = w.shape[1]
    if tm is None:
        tm = _pick_row_tile(m)
    mp = _round_up(m, tm)
    xp = _pad_rows(x2d, mp)
    out = pl.pallas_call(
        _linear_kernel,
        out_shape=jax.ShapeDtypeStruct((mp, n), x2d.dtype),
        grid_spec=pltpu.PrefetchScalarGridSpec(
            num_scalar_prefetch=0,
            grid=(mp // tm,),
            in_specs=[
                pl.BlockSpec((tm, k), lambda i: (i, 0)),
                # Weight/bias are grid-invariant; at attention-projection sizes
                # (E x E) the implicit 2x double-buffer is tiny, so BlockSpec
                # residency is kept instead of a manual one-shot DMA.
                pl.BlockSpec((k, n), lambda i: (0, 0)),
                pl.BlockSpec((1, n), lambda i: (0, 0)),
            ],
            out_specs=pl.BlockSpec((tm, n), lambda i: (i, 0)),
        ),
        compiler_params=pltpu.CompilerParams(
            dimension_semantics=("parallel",),
            vmem_limit_bytes=VMEM_LIMIT_BYTES),
        cost_estimate=pl.CostEstimate(
            flops=2 * mp * k * n, transcendentals=0,
            bytes_accessed=int(_nbytes(xp, w, b) + mp * n * xp.dtype.itemsize)),
    )(xp, w, b)
    return out[:m]


# --------------------------------------------------------------------------
# Scaled dot-product attention, one (batch, head) per grid step
# --------------------------------------------------------------------------
def _sdpa_kernel(q_ref, k_ref, v_ref, m_ref, o_ref, s_ref, *, scale):
    q = q_ref[0]                                    # (Sq, D)
    k = k_ref[0]                                    # (Sk, D)
    v = v_ref[0]                                    # (Sk, D)
    energy = jax.lax.dot_general(
        q, k, (((1,), (1,)), ((), ())),
        preferred_element_type=jnp.float32) * scale          # (Sq, Sk)
    # Reference module: masked_fill(mask == 0, -1e-10)  (note: NOT -inf).
    energy = jnp.where(m_ref[0] == 0, jnp.float32(-1e-10), energy)
    e_max = jnp.max(energy, axis=-1, keepdims=True)
    p = jnp.exp(energy - e_max)
    att = p / jnp.sum(p, axis=-1, keepdims=True)
    o = jnp.dot(att.astype(v.dtype), v, preferred_element_type=jnp.float32)
    o_ref[0] = o.astype(o_ref.dtype)
    s_ref[0] = att.astype(s_ref.dtype)


def scaled_dot_product_attention(qh, kh, vh, mask, *, scale):
    bh, sq, d = qh.shape
    sk = kh.shape[1]
    out, score = pl.pallas_call(
        functools.partial(_sdpa_kernel, scale=scale),
        out_shape=(jax.ShapeDtypeStruct((bh, sq, d), qh.dtype),
                   jax.ShapeDtypeStruct((bh, sq, sk), jnp.float32)),
        grid_spec=pltpu.PrefetchScalarGridSpec(
            num_scalar_prefetch=0,
            grid=(bh,),
            in_specs=[
                pl.BlockSpec((1, sq, d), lambda i: (i, 0, 0)),
                pl.BlockSpec((1, sk, d), lambda i: (i, 0, 0)),
                pl.BlockSpec((1, sk, d), lambda i: (i, 0, 0)),
                pl.BlockSpec((1, sq, sk), lambda i: (i, 0, 0)),
            ],
            out_specs=[
                pl.BlockSpec((1, sq, d), lambda i: (i, 0, 0)),
                pl.BlockSpec((1, sq, sk), lambda i: (i, 0, 0)),
            ],
        ),
        compiler_params=pltpu.CompilerParams(
            dimension_semantics=("parallel",),
            vmem_limit_bytes=VMEM_LIMIT_BYTES),
    )(qh, kh, vh, mask)
    return out, score


# --------------------------------------------------------------------------
# (Add +) LayerNorm
# --------------------------------------------------------------------------
def _ln_body(s, g_ref, b_ref, o_ref, eps):
    mu = jnp.mean(s, axis=-1, keepdims=True)
    d = s - mu
    var = jnp.mean(d * d, axis=-1, keepdims=True)
    inv = jax.lax.rsqrt(var + eps)
    o_ref[...] = (d * inv * g_ref[...].astype(jnp.float32)
                  + b_ref[...].astype(jnp.float32)).astype(o_ref.dtype)


def _add_ln_kernel(x_ref, r_ref, g_ref, b_ref, o_ref, *, eps):
    s = x_ref[...].astype(jnp.float32) + r_ref[...].astype(jnp.float32)
    _ln_body(s, g_ref, b_ref, o_ref, eps)


def _ln_kernel(x_ref, g_ref, b_ref, o_ref, *, eps):
    _ln_body(x_ref[...].astype(jnp.float32), g_ref, b_ref, o_ref, eps)


def _ln_call(kernel, inputs, shape3d, dtype, tm=None):
    b, s, e = shape3d
    m = b * s
    if tm is None:
        tm = _pick_row_tile(m)
    mp = _round_up(m, tm)
    row_inputs = [_pad_rows(a.reshape(m, e), mp) for a in inputs[:-2]]
    gamma, beta = inputs[-2], inputs[-1]
    in_specs = ([pl.BlockSpec((tm, e), lambda i: (i, 0)) for _ in row_inputs]
                + [pl.BlockSpec((1, e), lambda i: (0, 0)),
                   pl.BlockSpec((1, e), lambda i: (0, 0))])
    out = pl.pallas_call(
        kernel,
        out_shape=jax.ShapeDtypeStruct((mp, e), dtype),
        grid_spec=pltpu.PrefetchScalarGridSpec(
            num_scalar_prefetch=0,
            grid=(mp // tm,),
            in_specs=in_specs,
            out_specs=pl.BlockSpec((tm, e), lambda i: (i, 0)),
        ),
        compiler_params=pltpu.CompilerParams(
            dimension_semantics=("parallel",),
            vmem_limit_bytes=VMEM_LIMIT_BYTES),
    )(*row_inputs, gamma, beta)
    return out[:m].reshape(b, s, e)


def add_layernorm(x, r, gamma, beta, *, eps=1e-5):
    return _ln_call(functools.partial(_add_ln_kernel, eps=eps),
                    [x, r, gamma, beta], x.shape, x.dtype)


def layernorm(x, gamma, beta, *, eps=1e-5):
    return _ln_call(functools.partial(_ln_kernel, eps=eps),
                    [x, gamma, beta], x.shape, x.dtype)


# --------------------------------------------------------------------------
# Positionwise FFN: fc2(relu(fc1(x))), dropout == identity (eval mode)
# Fused over a tiled pf_dim reduction (grid = (rows, P // tp)).
# --------------------------------------------------------------------------
def _ffn_kernel(x_ref, w1_ref, b1_ref, w2_ref, b2_ref, o_ref, acc_ref):
    pk = pl.program_id(1)

    @pl.when(pk == 0)
    def _():
        acc_ref[...] = jnp.zeros_like(acc_ref)

    # fc1 K-tile: (tm, E) @ (E, tp) -> (tm, tp), bias + ReLU in f32.
    h = jnp.dot(x_ref[...], w1_ref[...], preferred_element_type=jnp.float32)
    h = jnp.maximum(h + b1_ref[...].astype(jnp.float32), 0.0)
    # fc2 K-tile: (tm, tp) @ (tp, E) accumulated into the f32 scratch.
    acc_ref[...] += jnp.dot(h.astype(w2_ref.dtype), w2_ref[...],
                            preferred_element_type=jnp.float32)

    @pl.when(pk == pl.num_programs(1) - 1)
    def _():
        # fc2 bias added exactly once, at finalize.
        o_ref[...] = (acc_ref[...] + b2_ref[...].astype(jnp.float32)
                      ).astype(o_ref.dtype)


def positionwise_ffn(x, w1, b1, w2, b2, *, tm=None, tp=None):
    """x: [B, S, E] -> [B, S, E].  fc1: E->P, fc2: P->E (weights (in, out))."""
    bsz, seq, e = x.shape
    p = w1.shape[1]
    assert e % 128 == 0 and p % 128 == 0, "pad embed_dim / pf_dim to 128 lanes"
    m = bsz * seq
    if tm is None:
        tm = _pick_row_tile(m, max_tile=256)
    mp = _round_up(m, tm)
    xp = _pad_rows(x.reshape(m, e), mp)
    if tp is None:
        # (E, tp)/(tp, E) weight tiles: keeps each double-buffered pair at a few
        # MiB even for large E/P, which fits v7x's 64 MiB VMEM comfortably.
        tp = min(p, 512)
    assert p % tp == 0

    flops = 4 * mp * e * p                       # two matmuls, 2*M*E*P each
    bytes_accessed = int(_nbytes(xp, w1, b1, w2, b2) + mp * e * xp.dtype.itemsize)

    out2d = pl.pallas_call(
        _ffn_kernel,
        out_shape=jax.ShapeDtypeStruct((mp, e), x.dtype),
        grid_spec=pltpu.PrefetchScalarGridSpec(
            num_scalar_prefetch=0,
            grid=(mp // tm, p // tp),
            in_specs=[
                pl.BlockSpec((tm, e), lambda i, k: (i, 0)),   # x rows (full E)
                pl.BlockSpec((e, tp), lambda i, k: (0, k)),   # fc1 weight K-tile
                pl.BlockSpec((1, tp), lambda i, k: (0, k)),   # fc1 bias K-tile
                pl.BlockSpec((tp, e), lambda i, k: (k, 0)),   # fc2 weight K-tile
                pl.BlockSpec((1, e), lambda i, k: (0, 0)),    # fc2 bias (finalize)
            ],
            out_specs=pl.BlockSpec((tm, e), lambda i, k: (i, 0)),
            scratch_shapes=[pltpu.VMEM((tm, e), jnp.float32)],
        ),
        compiler_params=pltpu.CompilerParams(
            dimension_semantics=("parallel", "arbitrary"),
            vmem_limit_bytes=VMEM_LIMIT_BYTES),
        cost_estimate=pl.CostEstimate(flops=flops, transcendentals=0,
                                      bytes_accessed=bytes_accessed),
    )(xp, w1, b1, w2, b2)
    return out2d[:m].reshape(bsz, seq, e)


# --------------------------------------------------------------------------
# Multi-head attention and the full decoder layer
# --------------------------------------------------------------------------
def multi_head_attention(p, query, key, value, mask, *, n_heads):
    bsz, sq, e = query.shape
    sk = key.shape[1]
    d = e // n_heads
    q = linear(query.reshape(-1, e), p["wq"], p["bq"]).reshape(bsz, sq, e)
    k = linear(key.reshape(-1, e), p["wk"], p["bk"]).reshape(bsz, sk, e)
    v = linear(value.reshape(-1, e), p["wv"], p["bv"]).reshape(bsz, sk, e)
    qh = q.reshape(bsz, sq, n_heads, d).transpose(0, 2, 1, 3).reshape(bsz * n_heads, sq, d)
    kh = k.reshape(bsz, sk, n_heads, d).transpose(0, 2, 1, 3).reshape(bsz * n_heads, sk, d)
    vh = v.reshape(bsz, sk, n_heads, d).transpose(0, 2, 1, 3).reshape(bsz * n_heads, sk, d)
    if mask is None:
        m = jnp.ones((bsz * n_heads, sq, sk), jnp.int32)
    else:
        m = jnp.broadcast_to(mask, (bsz, n_heads, sq, sk)).astype(jnp.int32)
        m = m.reshape(bsz * n_heads, sq, sk)
    # Reference module scales by sqrt(embed_dim), not sqrt(head_dim).
    weighted, score = scaled_dot_product_attention(
        qh, kh, vh, m, scale=1.0 / math.sqrt(e))
    weighted = weighted.reshape(bsz, n_heads, sq, d).transpose(0, 2, 1, 3).reshape(bsz, sq, e)
    out = linear(weighted.reshape(-1, e), p["wo"], p["bo"]).reshape(bsz, sq, e)
    return out, score.reshape(bsz, n_heads, sq, sk)


def decoder_layer_forward(params, y_emb, X_mask, y_mask, context, *, n_heads,
                          ffn_tp=None):
    """Matches DecoderLayer.forward in eval mode (all dropout == identity)."""
    sa_out, sa_score = multi_head_attention(
        params["self_att"], y_emb, y_emb, y_emb, y_mask, n_heads=n_heads)
    x1 = add_layernorm(y_emb, sa_out, params["ln1_g"], params["ln1_b"])
    ea_out, ea_score = multi_head_attention(
        params["enc_att"], x1, context, context, X_mask, n_heads=n_heads)
    x2 = add_layernorm(x1, ea_out, params["ln2_g"], params["ln2_b"])
    ff = positionwise_ffn(x2, params["ffn_w1"], params["ffn_b1"],
                          params["ffn_w2"], params["ffn_b2"], tp=ffn_tp)
    # The reference module layer-norms the FFN output with NO residual add.
    out = layernorm(ff, params["ln3_g"], params["ln3_b"])
    return out, sa_score, ea_score


# --------------------------------------------------------------------------
# Pure-JAX reference (mirrors the PyTorch eval-mode math exactly)
# --------------------------------------------------------------------------
def _ref_mha(p, query, key, value, mask, n_heads):
    bsz, sq, e = query.shape
    sk = key.shape[1]
    d = e // n_heads
    q = query @ p["wq"] + p["bq"]
    k = key @ p["wk"] + p["bk"]
    v = value @ p["wv"] + p["bv"]
    qh = q.reshape(bsz, sq, n_heads, d).transpose(0, 2, 1, 3)
    kh = k.reshape(bsz, sk, n_heads, d).transpose(0, 2, 1, 3)
    vh = v.reshape(bsz, sk, n_heads, d).transpose(0, 2, 1, 3)
    energy = jnp.einsum("bhqd,bhkd->bhqk", qh, kh) * (1.0 / math.sqrt(e))
    if mask is not None:
        energy = jnp.where(mask == 0, jnp.float32(-1e-10), energy)
    att = jax.nn.softmax(energy, axis=-1)
    w = jnp.einsum("bhqk,bhkd->bhqd", att, vh)
    w = w.transpose(0, 2, 1, 3).reshape(bsz, sq, e)
    return w @ p["wo"] + p["bo"], att


def _ref_ln(x, g, b, eps=1e-5):
    mu = x.mean(-1, keepdims=True)
    var = ((x - mu) ** 2).mean(-1, keepdims=True)
    return (x - mu) / jnp.sqrt(var + eps) * g + b


def _ref_decoder(params, y_emb, X_mask, y_mask, context, n_heads):
    sa, sas = _ref_mha(params["self_att"], y_emb, y_emb, y_emb, y_mask, n_heads)
    x1 = _ref_ln(y_emb + sa, params["ln1_g"], params["ln1_b"])
    ea, eas = _ref_mha(params["enc_att"], x1, context, context, X_mask, n_heads)
    x2 = _ref_ln(x1 + ea, params["ln2_g"], params["ln2_b"])
    ff = (jnp.maximum(x2 @ params["ffn_w1"] + params["ffn_b1"], 0.0)
          @ params["ffn_w2"] + params["ffn_b2"])
    return _ref_ln(ff, params["ln3_g"], params["ln3_b"]), sas, eas


# --------------------------------------------------------------------------
# Parameter init (PyTorch nn.Linear / nn.LayerNorm defaults)
# --------------------------------------------------------------------------
def _init_linear(key, fan_in, fan_out, dtype=jnp.float32):
    kw, kb = jax.random.split(key)
    bound = 1.0 / math.sqrt(fan_in)
    w = jax.random.uniform(kw, (fan_in, fan_out), dtype, -bound, bound)
    b = jax.random.uniform(kb, (1, fan_out), dtype, -bound, bound)
    return w, b


def _init_mha(key, e, dtype=jnp.float32):
    ks = jax.random.split(key, 4)
    wq, bq = _init_linear(ks[0], e, e, dtype)
    wk, bk = _init_linear(ks[1], e, e, dtype)
    wv, bv = _init_linear(ks[2], e, e, dtype)
    wo, bo = _init_linear(ks[3], e, e, dtype)
    return dict(wq=wq, bq=bq, wk=wk, bk=bk, wv=wv, bv=bv, wo=wo, bo=bo)


def init_decoder_params(key, e, pf, dtype=jnp.float32):
    ks = jax.random.split(key, 4)
    w1, b1 = _init_linear(ks[2], e, pf, dtype)
    w2, b2 = _init_linear(ks[3], pf, e, dtype)
    ones = jnp.ones((1, e), dtype)
    zeros = jnp.zeros((1, e), dtype)
    return dict(
        self_att=_init_mha(ks[0], e, dtype),
        enc_att=_init_mha(ks[1], e, dtype),
        ln1_g=ones, ln1_b=zeros,
        ln2_g=ones, ln2_b=zeros,
        ln3_g=ones, ln3_b=zeros,
        ffn_w1=w1, ffn_b1=b1, ffn_w2=w2, ffn_b2=b2,
    )


if __name__ == "__main__":
    # Small shapes consistent with the module (embed/pf dims 128-lane aligned).
    B, Sy, Sx = 2, 8, 16
    E, H, PF = 128, 4, 256

    key = jax.random.PRNGKey(0)
    k_param, k_y, k_ctx, k_bf16 = jax.random.split(key, 4)

    params = init_decoder_params(k_param, E, PF)
    y_emb = jax.random.normal(k_y, (B, Sy, E), jnp.float32)
    context = jax.random.normal(k_ctx, (B, Sx, E), jnp.float32)

    # Decoder-side causal mask [B,1,Sy,Sy]; encoder-side padding mask [B,1,1,Sx].
    y_mask = jnp.broadcast_to(
        jnp.tril(jnp.ones((Sy, Sy), jnp.int32))[None, None], (B, 1, Sy, Sy))
    src_len = jnp.array([Sx, Sx - 5], jnp.int32)
    X_mask = (jnp.arange(Sx)[None, :] < src_len[:, None]
              ).astype(jnp.int32)[:, None, None, :]

    out, sa_score, ea_score = decoder_layer_forward(
        params, y_emb, X_mask, y_mask, context, n_heads=H, ffn_tp=128)
    out = jax.block_until_ready(out)

    ref_out, ref_sa, ref_ea = _ref_decoder(params, y_emb, X_mask, y_mask, context, H)
    assert out.shape == (B, Sy, E)
    assert sa_score.shape == (B, H, Sy, Sy) and ea_score.shape == (B, H, Sy, Sx)
    # Tolerances sized for MXU f32-pass differences; real structural bugs
    # (wrong bias/mask/scale) show up at >> 1e-2.
    assert jnp.allclose(out, ref_out, atol=1e-3, rtol=1e-3), "decoder output mismatch"
    assert jnp.allclose(sa_score, ref_sa, atol=1e-3, rtol=1e-3), "self-attn score mismatch"
    assert jnp.allclose(ea_score, ref_ea, atol=1e-3, rtol=1e-3), "enc-attn score mismatch"

    # bf16 MXU path for the fused FFN (f32 accumulation), loose check vs f32 ref.
    xb = jax.random.normal(k_bf16, (B, Sy, E), jnp.float32)
    ff_bf16 = positionwise_ffn(
        xb.astype(jnp.bfloat16),
        params["ffn_w1"].astype(jnp.bfloat16), params["ffn_b1"].astype(jnp.bfloat16),
        params["ffn_w2"].astype(jnp.bfloat16), params["ffn_b2"].astype(jnp.bfloat16),
        tp=128)
    ff_bf16 = jax.block_until_ready(ff_bf16)
    ff_ref = (jnp.maximum(xb @ params["ffn_w1"] + params["ffn_b1"], 0.0)
              @ params["ffn_w2"] + params["ffn_b2"])
    assert jnp.allclose(ff_bf16.astype(jnp.float32), ff_ref,
                        atol=3e-2, rtol=3e-2), "bf16 FFN mismatch"

    print("KERNEL_OK")
</pallas_src>

<mosaic_0001>
module attributes {stable_mosaic.version = 11 : i64} {
  func.func @_linear_kernel(%arg0: i32, %arg1: memref<16x128xf32, #tpu.memory_space<vmem>>, %arg2: memref<128x128xf32, #tpu.memory_space<vmem>>, %arg3: memref<1x128xf32, #tpu.memory_space<vmem>>, %arg4: memref<16x128xf32, #tpu.memory_space<vmem>>) attributes {dimension_semantics = [#tpu.dimension_semantics<parallel>], iteration_bounds = array<i64: 1>, scalar_prefetch = 0 : i64, scratch_operands = 0 : i64, tpu.core_type = #tpu.core_type<tc>, window_params = [{transform_indices = @transform_0, window_bounds = array<i64: 16, 128>}, {pipeline_mode = #tpu.pipeline_mode<synchronous>, transform_indices = @transform_1, window_bounds = array<i64: 128, 128>}, {pipeline_mode = #tpu.pipeline_mode<synchronous>, transform_indices = @transform_2, window_bounds = array<i64: 1, 128>}, {transform_indices = @transform_3, window_bounds = array<i64: 16, 128>}]} {
    %c0 = arith.constant 0 : index
    %c0_0 = arith.constant 0 : index
    %0 = vector.load %arg1[%c0, %c0_0] : memref<16x128xf32, #tpu.memory_space<vmem>>, vector<16x128xf32>
    %c0_1 = arith.constant 0 : index
    %c0_2 = arith.constant 0 : index
    %1 = vector.load %arg2[%c0_1, %c0_2] : memref<128x128xf32, #tpu.memory_space<vmem>>, vector<128x128xf32>
    %cst = arith.constant dense<0.000000e+00> : vector<16x128xf32>
    %2 = tpu.matmul %0, %1, %cst {dimension_numbers = #tpu.dot_dimension_numbers<[1], [0], [0], [1], [0, 0, 1, 1], [], []>} : vector<16x128xf32>, vector<128x128xf32>, vector<16x128xf32> -> vector<16x128xf32>
    %c0_3 = arith.constant 0 : index
    %c0_4 = arith.constant 0 : index
    %3 = vector.load %arg3[%c0_3, %c0_4] : memref<1x128xf32, #tpu.memory_space<vmem>>, vector<1x128xf32>
    %4 = vector.broadcast %3 : vector<1x128xf32> to vector<16x128xf32>
    %5 = arith.addf %2, %4 : vector<16x128xf32>
    %c0_5 = arith.constant 0 : index
    %c0_6 = arith.constant 0 : index
    %6 = vector.load %arg4[%c0_5, %c0_6] : memref<16x128xf32, #tpu.memory_space<vmem>>, vector<16x128xf32>
    tpu.vector_store %arg4[%c0_5, %c0_6], %5 {strides = array<i32>} : memref<16x128xf32, #tpu.memory_space<vmem>>, vector<16x128xf32>,
    return
  }
  func.func @transform_0(%arg0: i32) -> (i32, i32) {
    %c0_i32 = arith.constant 0 : i32
    %c0_i32_0 = arith.constant 0 : i32
    return %arg0, %c0_i32 : i32, i32
  }
  func.func @transform_1(%arg0: i32) -> (i32, i32) {
    %c0_i32 = arith.constant 0 : i32
    %c0_i32_0 = arith.constant 0 : i32
    %c0_i32_1 = arith.constant 0 : i32
    return %c0_i32, %c0_i32_0 : i32, i32
  }
  func.func @transform_2(%arg0: i32) -> (i32, i32) {
    %c0_i32 = arith.constant 0 : i32
    %c0_i32_0 = arith.constant 0 : i32
    %c0_i32_1 = arith.constant 0 : i32
    return %c0_i32, %c0_i32_0 : i32, i32
  }
  func.func @transform_3(%arg0: i32) -> (i32, i32) {
    %c0_i32 = arith.constant 0 : i32
    %c0_i32_0 = arith.constant 0 : i32
    return %arg0, %c0_i32 : i32, i32
  }
}

</mosaic_0001>

<llo_original>
// kernel: tpu_custom_call.1
$region0: #{tpu_custom_call.1}
  #allocation0 [shape = 'u32[]', space=smem, size = 0x4, offset = 0x4, fixed_abs, tag = 'smem constant byte address 0x4 - core index']
  #allocation1 [shape = 'u32[72,128]{1,0:T(1,128)}', space=vmem, size = 0x9000, scoped, tag = 'internal scratch']
  %s0 = inlined_call_operand.hbm [shape: f32[16,128], index: 0, kind: input, shape index: {}]
  %s1 = inlined_call_operand.hbm [shape: f32[128,128], index: 1, kind: input, shape index: {}]
  %s2 = inlined_call_operand.vmem [shape: f32[1,128], index: 2, kind: input, shape index: {}]
  %s3 = inlined_call_operand.hbm [shape: f32[16,128], index: 3, kind: output, shape index: {}]
  %s4 = sld [smem:[#allocation0]]
  $region30: #{tpu_custom_call.1} parent=0
    _
  %s6 = ssub.s32 1, %s4
  %s7 = scalar_select 0, %s6, %s4
  $region1: #{tpu_custom_call.1} parent=0
    #allocation2 [shape = 'u8[8192]{0}', space=vmem, size = 0x2000, scoped, tag = 'input window, operand 0, single buffered']
    #allocation3 [shape = 's32[1]{0}', space=sflag, size = 0x4, scoped, tag = 'scoped memory for tpu_custom_call.1']
    #allocation4 [shape = 's32[1]{0}', space=sflag, size = 0x4, scoped, tag = 'scoped memory for tpu_custom_call.1']
    #allocation5 [shape = 'u8[65536]{0}', space=vmem, size = 0x10000, scoped, tag = 'input window, operand 1, single buffered']
    #allocation6 [shape = 's32[1]{0}', space=sflag, size = 0x4, scoped, tag = 'scoped memory for tpu_custom_call.1']
    #allocation7 [shape = 'u8[8192]{0}', space=vmem, size = 0x2000, scoped, tag = 'output window, operand 0, single buffered']
    %8 = vsyncpa [#allocation3], 0
    %9 = vsyncpa [#allocation6], 0
    %10 = vsyncpa [#allocation4], 0
    // Predicated region
    $region2: #{tpu_custom_call.1} parent=1 // pred_check
      _
    $region3: #{tpu_custom_call.1} parent=1 // pred_check_branch
      %12 = sbr.rel (0) target = $region5
    $region4: #{tpu_custom_call.1} parent=1 // pred_region
      %14 = vsyncadd [#allocation3], 0
      %s15 = sshll.u32 %s0, 4
      %s16 = int_to_ptr.hbm [resolvable:$true] %s15
      %s17 = sshll.u32 [#allocation2], 4
      %s18 = int_to_ptr.vmem [resolvable:$true] %s17
      %23 = dma.hbm_to_vmem [thread:$0]  %s16, 256, %s18, [#allocation3], 128, 128, 8
    $region5: #{tpu_custom_call.1} parent=1 // pred_fallthru
      _
    // Predicated region
    $region6: #{tpu_custom_call.1} parent=1 // pred_check
      _
    $region7: #{tpu_custom_call.1} parent=1 // pred_check_branch
      %25 = sbr.rel (0) target = $region9
    $region8: #{tpu_custom_call.1} parent=1 // pred_region
      %27 = vsyncadd [#allocation6], 0
      %s28 = sshll.u32 %s1, 4
      %s29 = int_to_ptr.hbm [resolvable:$true] %s28
      %s30 = sshll.u32 [#allocation5], 4
      %s31 = int_to_ptr.vmem [resolvable:$true] %s30
      %36 = dma.hbm_to_vmem [thread:$0]  %s29, 2048, %s31, [#allocation6], 128, 128, 8
    $region9: #{tpu_custom_call.1} parent=1 // pred_fallthru
      _
    // Predicated region
    $region10: #{tpu_custom_call.1} parent=1 // pred_check
      _
    $region11: #{tpu_custom_call.1} parent=1 // pred_check_branch
      %38 = sbr.rel (0) target = $region13
    $region12: #{tpu_custom_call.1} parent=1 // pred_region
      _
    $region13: #{tpu_custom_call.1} parent=1 // pred_fallthru
      _
    // Predicated region
    $region14: #{tpu_custom_call.1} parent=1 // pred_check
      _
    $region15: #{tpu_custom_call.1} parent=1 // pred_check_branch
      %40 = sbr.rel (0) target = $region17
    $region16: #{tpu_custom_call.1} parent=1 // pred_region
      %42 = dma.done [#allocation3], 256
    $region17: #{tpu_custom_call.1} parent=1 // pred_fallthru
      _
    // Predicated region
    $region18: #{tpu_custom_call.1} parent=1 // pred_check
      _
    $region19: #{tpu_custom_call.1} parent=1 // pred_check_branch
      %44 = sbr.rel (0) target = $region21
    $region20: #{tpu_custom_call.1} parent=1 // pred_region
      %46 = dma.done [#allocation6], 2048
    $region21: #{tpu_custom_call.1} parent=1 // pred_fallthru
      _
    %v47 = vld [vmem:[#allocation2] sm:$0xff]
    %v48 = vld [vmem:[#allocation2 + $0x8] sm:$0xff]
    %v49 = vld [vmem:[#allocation5] sm:$0xff]
    %v50 = vld [vmem:[#allocation5 + $0x8] sm:$0xff]
    %v51 = vld [vmem:[#allocation5 + $0x10] sm:$0xff]
    %v52 = vld [vmem:[#allocation5 + $0x18] sm:$0xff]
    %v53 = vld [vmem:[#allocation5 + $0x20] sm:$0xff]
    %v54 = vld [vmem:[#allocation5 + $0x28] sm:$0xff]
    %v55 = vld [vmem:[#allocation5 + $0x30] sm:$0xff]
    %v56 = vld [vmem:[#allocation5 + $0x38] sm:$0xff]
    %v57 = vld [vmem:[#allocation5 + $0x40] sm:$0xff]
    %v58 = vld [vmem:[#allocation5 + $0x48] sm:$0xff]
    %v59 = vld [vmem:[#allocation5 + $0x50] sm:$0xff]
    %v60 = vld [vmem:[#allocation5 + $0x58] sm:$0xff]
    %v61 = vld [vmem:[#allocation5 + $0x60] sm:$0xff]
    %v62 = vld [vmem:[#allocation5 + $0x68] sm:$0xff]
    %v63 = vld [vmem:[#allocation5 + $0x70] sm:$0xff]
    %v64 = vld [vmem:[#allocation5 + $0x78] sm:$0xff]
    %v65 = vld [vmem:[%s2] sm:$0x1]
    %v67 = vperm.slane %v65, 0
    %69 = vmatpush.msra.mxu0 %v64
    %70 = vmatpush.msra.mxu0 %v63
    %71 = vmatpush.msra.mxu0 %v62
    %72 = vmatpush.msra.mxu0 %v61
    %73 = vmatpush.msra.mxu0 %v60
    %74 = vmatpush.msra.mxu0 %v59
    %75 = vmatpush.msra.mxu0 %v58
    %76 = vmatpush.msra.mxu0 %v57
    %77 = vmatpush.msra.mxu0 %v56
    %78 = vmatpush.msra.mxu0 %v55
    %79 = vmatpush.msra.mxu0 %v54
    %80 = vmatpush.msra.mxu0 %v53
    %81 = vmatpush.msra.mxu0 %v52
    %82 = vmatpush.msra.mxu0 %v51
    %83 = vmatpush.msra.mxu0 %v50
    %84 = vmatpush.msra.mxu0 %v49
    %85 = vmatmul.f32.gmra.mxu0 %v47
    %v86 = vpop.f32.mrf.mxu0
    %v87 = vadd.f32 %v67, %v86
    %88 = vmatmul.f32.gmra.mxu0 %v48
    %v89 = vpop.f32.mrf.mxu0
    %v90 = vadd.f32 %v67, %v89
    %91 = vdwg.mxu0
    %92 = vst [vmem:[#allocation7] sm:$0xff] %v87
    %93 = vst [vmem:[#allocation7 + $0x8] sm:$0xff] %v90
    // Predicated region
    $region22: #{tpu_custom_call.1} parent=1 // pred_check
      _
    $region23: #{tpu_custom_call.1} parent=1 // pred_check_branch
      %95 = sbr.rel (0) target = $region25
    $region24: #{tpu_custom_call.1} parent=1 // pred_region
      %97 = vsyncadd [#allocation4], 0
      %s98 = sshll.u32 [#allocation7], 4
      %s99 = int_to_ptr.vmem [resolvable:$true] %s98
      %s100 = sshll.u32 %s3, 4
      %s101 = int_to_ptr.hbm [resolvable:$true] %s100
      %106 = dma.vmem_to_hbm [thread:$0]  %s99, 256, %s101, [#allocation4], 128, 128, 8
    $region25: #{tpu_custom_call.1} parent=1 // pred_fallthru
      _
    // Predicated region
    $region26: #{tpu_custom_call.1} parent=1 // pred_check
      _
    $region27: #{tpu_custom_call.1} parent=1 // pred_check_branch
      %108 = sbr.rel (0) target = $region29
    $region28: #{tpu_custom_call.1} parent=1 // pred_region
      %110 = dma.done [#allocation4], 256
    $region29: #{tpu_custom_call.1} parent=1 // pred_fallthru
      _
    %111 = vsyncpa [#allocation3], 1
    %112 = vsyncpa [#allocation6], 1
    %113 = vsyncpa [#allocation4], 1

</llo_original>
